<compile_context>
chip_gen: v5e
topology: v5e:2x2
jax: 0.10.0
libtpu: 0.0.40
codegen_flags: <defaults>
</compile_context>

<pallas_src>
import math

import jax
import jax.numpy as jnp
from jax.experimental import pallas as pl
from jax.experimental.pallas import tpu as pltpu


def _vmem_limit_bytes():
    """Scoped-VMEM limit sized for the actual chip (v5e/v6e: 128 MiB, v7x: 64 MiB)."""
    cap = 64 * 1024 * 1024  # conservative default = v7x per-TC VMEM
    try:
        cap = int(pltpu.get_tpu_info().vmem_capacity_bytes)
    except Exception:
        pass
    # Use ~3/4 of physical VMEM, never more than 96 MiB.
    return max(32 * 1024 * 1024, min((cap * 3) // 4, 96 * 1024 * 1024))


# ---------------------------------------------------------------------------
# Kernels
# ---------------------------------------------------------------------------

def _concat_lane_kernel(*refs):
    """Lane-dense path: in_i (TN, C_i*inner), out (TN, total*inner)."""
    *in_refs, o_ref = refs
    off = 0
    for r in in_refs:
        w = r.shape[1]
        o_ref[:, off:off + w] = r[...].astype(o_ref.dtype)  # full-width lane store
        off += w


def _concat_chan_kernel(*refs):
    """Fallback path: in_i (TN, C_i, T_IN), out (TN, total, T_IN)."""
    *in_refs, o_ref = refs
    off = 0
    for r in in_refs:
        c = r.shape[1]
        o_ref[:, off:off + c, :] = r[...].astype(o_ref.dtype)
        off += c


# ---------------------------------------------------------------------------
# Wrapper
# ---------------------------------------------------------------------------

def _valid_outer_tiles(outer):
    """Tile sizes for a 2-D block's second-to-last dim: multiple of 8 or == outer."""
    tns = list(range(8 * (outer // 8), 0, -8))
    if outer not in tns:
        tns = [outer] + tns
    return tns  # descending


def pallas_concat(tensors, dim=1, *, block_budget_bytes=None):
    """torch.cat(tensors, dim) as a single tiled Pallas copy kernel."""
    tensors = [jnp.asarray(t) for t in tensors]
    if not tensors:
        raise ValueError("pallas_concat needs at least one tensor")

    ndim = tensors[0].ndim
    d = dim % ndim
    base = tensors[0].shape
    for t in tensors:
        if t.ndim != ndim or any(
            t.shape[a] != base[a] for a in range(ndim) if a != d
        ):
            raise ValueError("concat inputs must match on all non-concat dims")

    out_dtype = jnp.result_type(*tensors)
    total = sum(t.shape[d] for t in tensors)
    out_shape = tuple(base[:d]) + (total,) + tuple(base[d + 1:])

    # Drop zero-sized inputs (a zero-extent block dim would fail lowering).
    tensors = [t for t in tensors if t.shape[d] > 0]
    sizes = [t.shape[d] for t in tensors]

    outer = math.prod(base[:d])
    inner = math.prod(base[d + 1:])

    if total == 0 or outer == 0 or inner == 0:
        return jnp.zeros(out_shape, out_dtype)
    if len(tensors) == 1:
        return tensors[0].astype(out_dtype).reshape(out_shape)

    vmem_limit = _vmem_limit_bytes()
    budget = (vmem_limit * 7) // 10 if block_budget_bytes is None else int(block_budget_bytes)

    out_isz = jnp.dtype(out_dtype).itemsize
    in_isz = [t.dtype.itemsize for t in tensors]

    in_bytes = sum(t.size * t.dtype.itemsize for t in tensors)
    out_bytes = outer * total * inner * out_isz
    cost = pl.CostEstimate(flops=0, transcendentals=0,
                           bytes_accessed=in_bytes + out_bytes)

    # ---- Path A: lane-dense 2-D layout (preferred) --------------------------
    widths = [s * inner for s in sizes]
    total_w = total * inner

    def footprint_a(tn):
        blk = tn * total_w * out_isz + sum(
            tn * w * isz for w, isz in zip(widths, in_isz))
        return 2 * blk  # double-buffered pipeline

    fitting = [tn for tn in _valid_outer_tiles(outer) if footprint_a(tn) <= budget]
    tn_a = None
    if fitting:
        if outer >= 16:
            # Prefer >= 2 grid steps so both TensorCores on v7x get work.
            half = [tn for tn in fitting if tn <= outer // 2]
            tn_a = max(half) if half else max(fitting)
        else:
            tn_a = max(fitting)

    if tn_a is not None:
        xs = [t.reshape(outer, w) for t, w in zip(tensors, widths)]
        grid = (pl.cdiv(outer, tn_a),)
        in_specs = [pl.BlockSpec((tn_a, w), lambda n: (n, 0)) for w in widths]
        out_spec = pl.BlockSpec((tn_a, total_w), lambda n: (n, 0))
        call_shape = (outer, total_w)
        kernel = _concat_lane_kernel
        dim_sem = ("parallel",)
    else:
        # ---- Path B: 3-D fallback for rows too big for the lane-dense layout
        xs = [t.reshape(outer, s, inner) for t, s in zip(tensors, sizes)]
        tn = min(outer, 8)
        bytes_per_lane = total * out_isz + sum(
            s * isz for s, isz in zip(sizes, in_isz))

        def max_tin(tn_):
            return budget // (2 * tn_ * bytes_per_lane)

        # Shrink tn (down to 1) before settling on the lane tile.
        while tn > 1 and max_tin(tn) < min(inner, 128):
            tn = max(1, tn // 2)
        cap = max(1, max_tin(tn))
        if cap >= inner or inner <= 128:
            t_in = inner
        else:
            t_in = max(128, (min(cap, inner) // 128) * 128)
        t_in = min(t_in, inner)

        grid = (pl.cdiv(outer, tn), pl.cdiv(inner, t_in))
        in_specs = [pl.BlockSpec((tn, s, t_in), lambda n, k: (n, 0, k)) for s in sizes]
        out_spec = pl.BlockSpec((tn, total, t_in), lambda n, k: (n, 0, k))
        call_shape = (outer, total, inner)
        kernel = _concat_chan_kernel
        dim_sem = ("parallel", "parallel")

    out = pl.pallas_call(
        kernel,
        out_shape=jax.ShapeDtypeStruct(call_shape, out_dtype),
        grid_spec=pltpu.PrefetchScalarGridSpec(
            num_scalar_prefetch=0,
            grid=grid,
            in_specs=in_specs,
            out_specs=out_spec,
        ),
        compiler_params=pltpu.CompilerParams(
            dimension_semantics=dim_sem,
            vmem_limit_bytes=int(vmem_limit),
        ),
        cost_estimate=cost,
    )(*xs)

    return out.reshape(out_shape)


def concat_forward(x, dimension=1, selectPos=None, **kwargs):
    """Pallas implementation of Concat.forward."""
    if isinstance(selectPos, int):
        tensors = [x[0][selectPos], x[1]]
    else:
        tensors = list(x)
    return pallas_concat(tensors, dim=dimension, **kwargs)


if __name__ == "__main__":
    key = jax.random.PRNGKey(0)
    k1, k2, k3, k4, k5 = jax.random.split(key, 5)

    # 1) YOLO-style channel concat: two NCHW feature maps, cat along dim=1.
    a = jax.random.normal(k1, (2, 4, 16, 16), dtype=jnp.float32)
    b = jax.random.normal(k2, (2, 8, 16, 16), dtype=jnp.float32)
    out = jax.block_until_ready(concat_forward([a, b], dimension=1))
    ref = jnp.concatenate([a, b], axis=1)
    assert out.shape == (2, 12, 16, 16), out.shape
    assert jnp.array_equal(out, ref), "mismatch (default path)"

    # 2) selectPos path: x = [[a, c], b] -> cat([x[0][p], x[1]], dim)
    c = jax.random.normal(k3, (2, 4, 16, 16), dtype=jnp.float32)
    out2 = jax.block_until_ready(concat_forward([[a, c], b], dimension=1, selectPos=1))
    assert jnp.array_equal(out2, jnp.concatenate([c, b], axis=1)), "mismatch (selectPos)"

    # 3) Three-input concat.
    e = jax.random.normal(k4, (2, 6, 16, 16), dtype=jnp.float32)
    out3 = jax.block_until_ready(concat_forward([a, b, e], dimension=1))
    assert jnp.array_equal(out3, jnp.concatenate([a, b, e], axis=1)), "mismatch (3 inputs)"

    # 4) bf16 pass-through: no f32 upcast anywhere (half the HBM traffic).
    a16, b16 = a.astype(jnp.bfloat16), b.astype(jnp.bfloat16)
    out4 = jax.block_until_ready(concat_forward([a16, b16]))
    assert out4.dtype == jnp.bfloat16
    assert jnp.array_equal(out4, jnp.concatenate([a16, b16], axis=1)), "mismatch (bf16)"

    # 5) Mixed dtypes: promotion happens in-kernel, not in the wrapper.
    out5 = jax.block_until_ready(concat_forward([a, b16]))
    assert out5.dtype == jnp.float32
    assert jnp.array_equal(out5, jnp.concatenate([a, b16], axis=1)), "mismatch (mixed dtype)"

    # 6) Concat along the last dim (inner == 1 -> lane-dense 2-D path).
    a6 = jax.random.normal(k5, (2, 4, 16, 3), dtype=jnp.float32)
    b6 = jax.random.normal(k1, (2, 4, 16, 5), dtype=jnp.float32)
    out6 = jax.block_until_ready(concat_forward([a6, b6], dimension=-1))
    assert jnp.array_equal(out6, jnp.concatenate([a6, b6], axis=-1)), "mismatch (last dim)"

    # 7) Concat along dim=0.
    c7 = jax.random.normal(k2, (3, 4, 16, 16), dtype=jnp.float32)
    out7 = jax.block_until_ready(concat_forward([a, c7], dimension=0))
    assert jnp.array_equal(out7, jnp.concatenate([a, c7], axis=0)), "mismatch (dim 0)"

    # 8) Force the 3-D fallback path with a tiny block budget (covers Path B).
    out8 = jax.block_until_ready(
        concat_forward([a, b], dimension=1, block_budget_bytes=64 * 1024))
    assert jnp.array_equal(out8, ref), "mismatch (3-D fallback path)"

    print("KERNEL_OK")
</pallas_src>

<mosaic_0001>
module attributes {stable_mosaic.version = 11 : i64} {
  func.func @_concat_lane_kernel(%arg0: i32, %arg1: memref<2x1024xf32, #tpu.memory_space<vmem>>, %arg2: memref<2x2048xf32, #tpu.memory_space<vmem>>, %arg3: memref<2x3072xf32, #tpu.memory_space<vmem>>) attributes {dimension_semantics = [#tpu.dimension_semantics<parallel>], iteration_bounds = array<i64: 1>, scalar_prefetch = 0 : i64, scratch_operands = 0 : i64, tpu.core_type = #tpu.core_type<tc>, window_params = [{transform_indices = @transform_0, window_bounds = array<i64: 2, 1024>}, {transform_indices = @transform_1, window_bounds = array<i64: 2, 2048>}, {transform_indices = @transform_2, window_bounds = array<i64: 2, 3072>}]} {
    %c0 = arith.constant 0 : index
    %c0_0 = arith.constant 0 : index
    %0 = vector.load %arg1[%c0, %c0_0] : memref<2x1024xf32, #tpu.memory_space<vmem>>, vector<2x1024xf32>
    %c0_1 = arith.constant 0 : index
    %c0_2 = arith.constant 0 : index
    %1 = vector.load %arg3[%c0_1, %c0_2] : memref<2x3072xf32, #tpu.memory_space<vmem>>, vector<2x1024xf32>
    tpu.vector_store %arg3[%c0_1, %c0_2], %0 {strides = array<i32>} : memref<2x3072xf32, #tpu.memory_space<vmem>>, vector<2x1024xf32>,
    %c0_3 = arith.constant 0 : index
    %c0_4 = arith.constant 0 : index
    %2 = vector.load %arg2[%c0_3, %c0_4] : memref<2x2048xf32, #tpu.memory_space<vmem>>, vector<2x2048xf32>
    %c0_5 = arith.constant 0 : index
    %c1024 = arith.constant 1024 : index
    %3 = vector.load %arg3[%c0_5, %c1024] : memref<2x3072xf32, #tpu.memory_space<vmem>>, vector<2x2048xf32>
    tpu.vector_store %arg3[%c0_5, %c1024], %2 {strides = array<i32>} : memref<2x3072xf32, #tpu.memory_space<vmem>>, vector<2x2048xf32>,
    return
  }
  func.func @transform_0(%arg0: i32) -> (i32, i32) {
    %c0_i32 = arith.constant 0 : i32
    %c0_i32_0 = arith.constant 0 : i32
    return %arg0, %c0_i32 : i32, i32
  }
  func.func @transform_1(%arg0: i32) -> (i32, i32) {
    %c0_i32 = arith.constant 0 : i32
    %c0_i32_0 = arith.constant 0 : i32
    return %arg0, %c0_i32 : i32, i32
  }
  func.func @transform_2(%arg0: i32) -> (i32, i32) {
    %c0_i32 = arith.constant 0 : i32
    %c0_i32_0 = arith.constant 0 : i32
    return %arg0, %c0_i32 : i32, i32
  }
}

</mosaic_0001>

<llo_original>
// kernel: tpu_custom_call.1
$region0: #{tpu_custom_call.1}
  #allocation0 [shape = 'u32[]', space=smem, size = 0x4, offset = 0x4, fixed_abs, tag = 'smem constant byte address 0x4 - core index']
  #allocation1 [shape = 'u32[72,128]{1,0:T(1,128)}', space=vmem, size = 0x9000, scoped, tag = 'internal scratch']
  %s0 = inlined_call_operand.hbm [shape: f32[2,1024], index: 0, kind: input, shape index: {}]
  %s1 = inlined_call_operand.hbm [shape: f32[2,2048], index: 1, kind: input, shape index: {}]
  %s2 = inlined_call_operand.hbm [shape: f32[2,3072], index: 2, kind: output, shape index: {}]
  %s3 = sld [smem:[#allocation0]]
  $region26: #{tpu_custom_call.1} parent=0
    _
  %s5 = ssub.s32 1, %s3
  %s6 = scalar_select 0, %s5, %s3
  $region1: #{tpu_custom_call.1} parent=0
    #allocation2 [shape = 'u8[8192]{0}', space=vmem, size = 0x2000, scoped, tag = 'input window, operand 0, single buffered']
    #allocation3 [shape = 's32[1]{0}', space=sflag, size = 0x4, scoped, tag = 'scoped memory for tpu_custom_call.1']
    #allocation4 [shape = 's32[1]{0}', space=sflag, size = 0x4, scoped, tag = 'scoped memory for tpu_custom_call.1']
    #allocation5 [shape = 'u8[16384]{0}', space=vmem, size = 0x4000, scoped, tag = 'input window, operand 1, single buffered']
    #allocation6 [shape = 's32[1]{0}', space=sflag, size = 0x4, scoped, tag = 'scoped memory for tpu_custom_call.1']
    #allocation7 [shape = 'u8[24576]{0}', space=vmem, size = 0x6000, scoped, tag = 'output window, operand 0, single buffered']
    %7 = vsyncpa [#allocation3], 0
    %8 = vsyncpa [#allocation6], 0
    %9 = vsyncpa [#allocation4], 0
    // Predicated region
    $region2: #{tpu_custom_call.1} parent=1 // pred_check
      _
    $region3: #{tpu_custom_call.1} parent=1 // pred_check_branch
      %11 = sbr.rel (0) target = $region5
    $region4: #{tpu_custom_call.1} parent=1 // pred_region
      %13 = vsyncadd [#allocation3], 0
      %s15 = sshll.u32 %s0, 4
      %s16 = int_to_ptr.hbm [resolvable:$true] %s15
      %s17 = sshll.u32 [#allocation2], 4
      %s18 = int_to_ptr.vmem [resolvable:$true] %s17
      %20 = dma.hbm_to_vmem [thread:$0]  %s16, 256, %s18, [#allocation3]
    $region5: #{tpu_custom_call.1} parent=1 // pred_fallthru
      _
    // Predicated region
    $region6: #{tpu_custom_call.1} parent=1 // pred_check
      _
    $region7: #{tpu_custom_call.1} parent=1 // pred_check_branch
      %22 = sbr.rel (0) target = $region9
    $region8: #{tpu_custom_call.1} parent=1 // pred_region
      %24 = vsyncadd [#allocation6], 0
      %s26 = sshll.u32 %s1, 4
      %s27 = int_to_ptr.hbm [resolvable:$true] %s26
      %s28 = sshll.u32 [#allocation5], 4
      %s29 = int_to_ptr.vmem [resolvable:$true] %s28
      %31 = dma.hbm_to_vmem [thread:$0]  %s27, 512, %s29, [#allocation6]
    $region9: #{tpu_custom_call.1} parent=1 // pred_fallthru
      _
    // Predicated region
    $region10: #{tpu_custom_call.1} parent=1 // pred_check
      _
    $region11: #{tpu_custom_call.1} parent=1 // pred_check_branch
      %33 = sbr.rel (0) target = $region13
    $region12: #{tpu_custom_call.1} parent=1 // pred_region
      %35 = dma.done [#allocation3], 256
    $region13: #{tpu_custom_call.1} parent=1 // pred_fallthru
      _
    // Predicated region
    $region14: #{tpu_custom_call.1} parent=1 // pred_check
      _
    $region15: #{tpu_custom_call.1} parent=1 // pred_check_branch
      %37 = sbr.rel (0) target = $region17
    $region16: #{tpu_custom_call.1} parent=1 // pred_region
      %39 = dma.done [#allocation6], 512
    $region17: #{tpu_custom_call.1} parent=1 // pred_fallthru
      _
    %v40 = vld [vmem:[#allocation2] sm:$0xff]
    %v41 = vld [vmem:[#allocation2 + $0x8] sm:$0xff]
    %42 = vst [vmem:[#allocation7] sm:$0xff] %v40
    %43 = vst [vmem:[#allocation7 + $0x8] sm:$0xff] %v41
    %v44 = vld [vmem:[#allocation5] sm:$0xff]
    %v45 = vld [vmem:[#allocation5 + $0x8] sm:$0xff]
    %v46 = vld [vmem:[#allocation5 + $0x10] sm:$0xff]
    %v47 = vld [vmem:[#allocation5 + $0x18] sm:$0xff]
    %48 = vst [vmem:[#allocation7 + $0x10] sm:$0xff] %v44
    %49 = vst [vmem:[#allocation7 + $0x18] sm:$0xff] %v45
    %50 = vst [vmem:[#allocation7 + $0x20] sm:$0xff] %v46
    %51 = vst [vmem:[#allocation7 + $0x28] sm:$0xff] %v47
    // Predicated region
    $region18: #{tpu_custom_call.1} parent=1 // pred_check
      _
    $region19: #{tpu_custom_call.1} parent=1 // pred_check_branch
      %53 = sbr.rel (0) target = $region21
    $region20: #{tpu_custom_call.1} parent=1 // pred_region
      %55 = vsyncadd [#allocation4], 0
      %s57 = sshll.u32 [#allocation7], 4
      %s58 = int_to_ptr.vmem [resolvable:$true] %s57
      %s59 = sshll.u32 %s2, 4
      %s60 = int_to_ptr.hbm [resolvable:$true] %s59
      %62 = dma.vmem_to_hbm [thread:$0]  %s58, 768, %s60, [#allocation4]
    $region21: #{tpu_custom_call.1} parent=1 // pred_fallthru
      _
    // Predicated region
    $region22: #{tpu_custom_call.1} parent=1 // pred_check
      _
    $region23: #{tpu_custom_call.1} parent=1 // pred_check_branch
      %64 = sbr.rel (0) target = $region25
    $region24: #{tpu_custom_call.1} parent=1 // pred_region
      %66 = dma.done [#allocation4], 768
    $region25: #{tpu_custom_call.1} parent=1 // pred_fallthru
      _
    %67 = vsyncpa [#allocation3], 1
    %68 = vsyncpa [#allocation6], 1
    %69 = vsyncpa [#allocation4], 1

</llo_original>
